<compile_context>
chip_gen: v7x
topology: tpu7x:2x2x1
jax: 0.10.0
libtpu: 0.0.40
codegen_flags: <defaults>
</compile_context>

<pallas_src>
import functools
import math

import numpy as np
import jax
import jax.numpy as jnp
from jax.experimental import pallas as pl
from jax.experimental.pallas import tpu as pltpu

_LN2 = math.log(2.0)


def _carlos_plus(x):
    # carlosPlus activation: 2 * (softplus(x) - log(2))
    return 2.0 * (jax.nn.softplus(x) - _LN2)


def _round_up(x, m):
    return ((x + m - 1) // m) * m


# ---------------------------------------------------------------------------
# Fused forward kernel: two merged GEMM chains + one add into a packed slab.
# ---------------------------------------------------------------------------
def _splice_kernel(x_ref, *refs, enc_n, dec_n, compute_dtype):
    out_ref = refs[-1]
    params = refs[:-1]
    enc = [(params[2 * l], params[2 * l + 1]) for l in range(enc_n)]
    off = 2 * enc_n
    dec = [(params[off + 2 * l], params[off + 2 * l + 1]) for l in range(dec_n)]

    def chain(h, layers):
        n = len(layers)
        acc = None
        for l, (w, b) in enumerate(layers):
            acc = jnp.dot(h, w[...], preferred_element_type=jnp.float32) + b[...]
            if l < n - 1:                       # no activation after final layer
                h = _carlos_plus(acc).astype(compute_dtype)
        return acc

    # Encoder chain output: packed latents [z_a | z_a2b | z_b2a | z_b | 0...]
    enc_packed = chain(x_ref[...], enc)
    # Decoder chain consumes the packed latent slab directly (zero rows for
    # unused / padded columns) and writes [0... | a_hat | b_hat | 0...].
    dec_packed = chain(enc_packed.astype(compute_dtype), dec)
    out_ref[...] = (enc_packed + dec_packed).astype(out_ref.dtype)


def _choose_tile(B, batch_tile, in_w, out_w, in_bytes, out_bytes, param_bytes):
    tb = min(batch_tile, _round_up(B, 8))
    if B >= 16:                       # keep >= 2 grid steps (v7x: 2 TensorCores)
        tb = min(tb, _round_up(-(-B // 2), 8))
    # Conservative VMEM budget valid under v5e/v6e/v7x scoped defaults.
    budget = 24 * 1024 * 1024
    per_row = 2 * (in_w * in_bytes + out_w * out_bytes)  # double-buffered streams
    avail = budget - 2 * param_bytes
    if avail > per_row * 8:
        tb = min(tb, (avail // per_row) // 8 * 8)
    return max(tb, 8)


def _splice_forward(x_a, x_b, flat_params, *, meta, batch_tile, compute_dtype):
    (enc_n, dec_n, n_pa, n_pb, n_sh, n_a, n_b, out_w,
     flops_per_row, trans_per_row, param_bytes) = meta

    B = x_a.shape[0]
    in_w = n_a + n_b
    x = jnp.concatenate([x_a, x_b], axis=1).astype(compute_dtype)

    in_bytes = np.dtype(compute_dtype).itemsize
    tb = _choose_tile(B, batch_tile, in_w, out_w, in_bytes, 4, param_bytes)
    grid_b = pl.cdiv(B, tb)           # ragged tail handled by block masking

    in_specs = [pl.BlockSpec((tb, in_w), lambda i: (i, 0))]
    for prm in flat_params:           # weights/biases: constant -> VMEM-resident
        in_specs.append(pl.BlockSpec(prm.shape, lambda i, nd=prm.ndim: (0,) * nd))
    out_spec = pl.BlockSpec((tb, out_w), lambda i: (i, 0))

    kernel = functools.partial(_splice_kernel, enc_n=enc_n, dec_n=dec_n,
                               compute_dtype=compute_dtype)
    cost = pl.CostEstimate(
        flops=int(flops_per_row * B),
        transcendentals=int(trans_per_row * B),
        bytes_accessed=int(B * (in_w * in_bytes + out_w * 4) + param_bytes))

    out = pl.pallas_call(
        kernel,
        out_shape=jax.ShapeDtypeStruct((B, out_w), jnp.float32),
        grid=(grid_b,),
        in_specs=in_specs,
        out_specs=out_spec,
        compiler_params=pltpu.CompilerParams(
            dimension_semantics=("parallel",)),
        cost_estimate=cost,
    )(x, *flat_params)

    # Packed column layout: [ z_a | z_a2b | z_b2a | z_b | a_hat | b_hat | pad ]
    L = n_pa + 2 * n_sh + n_pb
    z_a = out[:, :n_pa]
    z_a2b = out[:, n_pa:n_pa + n_sh]
    z_b2a = out[:, n_pa + n_sh:n_pa + 2 * n_sh]
    z_b = out[:, n_pa + 2 * n_sh:L]
    a_hat = out[:, L:L + n_a]
    b_hat = out[:, L + n_a:L + n_a + n_b]
    return z_a, z_b2a, z_a2b, z_b, a_hat, b_hat


# ---------------------------------------------------------------------------
# Parameter construction (PyTorch-Linear-style uniform init) & offline fusion
# ---------------------------------------------------------------------------
def _init_linear(key, n_in, n_out):
    kw, kb = jax.random.split(key)
    bound = 1.0 / math.sqrt(n_in)
    w = jax.random.uniform(kw, (n_in, n_out), jnp.float32, -bound, bound)
    b = jax.random.uniform(kb, (1, n_out), jnp.float32, -bound, bound)
    return w, b


def _make_mlp(key, n_in, hidden, n_out):
    dims = [n_in] + list(hidden) + [n_out]
    params = []
    for i in range(len(dims) - 1):
        key, sub = jax.random.split(key)
        params.append(_init_linear(sub, dims[i], dims[i + 1]))
    return params, key


def _block_diag(mats):
    rows = sum(m.shape[0] for m in mats)
    cols = sum(m.shape[1] for m in mats)
    out = jnp.zeros((rows, cols), mats[0].dtype)
    r = c = 0
    for m in mats:
        out = out.at[r:r + m.shape[0], c:c + m.shape[1]].set(m)
        r += m.shape[0]
        c += m.shape[1]
    return out


def _expand_rows(w, row_map, total_rows):
    """Scatter rows of `w` into a (total_rows, w.cols) zero matrix.
    row_map: list of (src_start, dst_start, length)."""
    out = jnp.zeros((total_rows, w.shape[1]), w.dtype)
    for s, d, n in row_map:
        out = out.at[d:d + n, :].set(w[s:s + n, :])
    return out


def _expand_cols(w, col_off, total_cols):
    out = jnp.zeros((w.shape[0], total_cols), w.dtype)
    return out.at[:, col_off:col_off + w.shape[1]].set(w)


def _build_encoder_chain(nets, in_offsets, in_dims, n_in_total, out_w):
    """Merge 4 same-depth encoders (F_a, F_a2b, F_b2a, F_b) into one MLP whose
    final output lands at packed columns [0, L) (zeros elsewhere)."""
    depth = len(nets[0])
    widths0 = [net[0][0].shape[1] for net in nets]
    w0 = jnp.zeros((n_in_total, sum(widths0)), jnp.float32)
    col = 0
    for net, off, dim in zip(nets, in_offsets, in_dims):
        w, _ = net[0]
        w0 = w0.at[off:off + dim, col:col + w.shape[1]].set(w)
        col += w.shape[1]
    b0 = jnp.concatenate([net[0][1] for net in nets], axis=1)
    layers = [[w0, b0]]
    for l in range(1, depth):
        layers.append([_block_diag([net[l][0] for net in nets]),
                       jnp.concatenate([net[l][1] for net in nets], axis=1)])
    wf, bf = layers[-1]               # pad final layer columns to packed width
    layers[-1] = [_expand_cols(wf, 0, out_w), _expand_cols(bf, 0, out_w)]
    return layers


def _build_decoder_chain(G_a, G_b, n_pa, n_pb, n_sh, n_a, n_b, out_w):
    """Merge G_a and G_b into one MLP that reads the packed latent slab and
    writes into packed columns [L, L+n_a+n_b)."""
    L = n_pa + 2 * n_sh + n_pb
    depth = len(G_a)
    # First-layer rows scattered so no torch.cat is needed:
    #   G_a input = cat(z_a, z_b2a); G_b input = cat(z_b, z_a2b)
    row_map_a = [(0, 0, n_pa), (n_pa, n_pa + n_sh, n_sh)]
    row_map_b = [(0, n_pa + 2 * n_sh, n_pb), (n_pb, n_pa, n_sh)]
    wa0 = _expand_rows(G_a[0][0], row_map_a, out_w)
    wb0 = _expand_rows(G_b[0][0], row_map_b, out_w)
    col_a = L
    if depth == 1:
        w = _expand_cols(wa0, col_a, out_w) + _expand_cols(wb0, col_a + n_a, out_w)
        b = (_expand_cols(G_a[0][1], col_a, out_w)
             + _expand_cols(G_b[0][1], col_a + n_a, out_w))
        return [[w, b]]
    layers = [[jnp.concatenate([wa0, wb0], axis=1),
               jnp.concatenate([G_a[0][1], G_b[0][1]], axis=1)]]
    for l in range(1, depth - 1):
        layers.append([_block_diag([G_a[l][0], G_b[l][0]]),
                       jnp.concatenate([G_a[l][1], G_b[l][1]], axis=1)])
    wf = _expand_cols(_block_diag([G_a[-1][0], G_b[-1][0]]), col_a, out_w)
    bf = _expand_cols(jnp.concatenate([G_a[-1][1], G_b[-1][1]], axis=1),
                      col_a, out_w)
    layers.append([wf, bf])
    return layers


class SpliceCoreJax:
    """JAX/Pallas port of SPLICECore (dense, conv=False): one fused kernel."""

    def __init__(self, key, n_a, n_b, n_shared, n_private_a, n_private_b,
                 enc_layers, dec_layers, compute_dtype=jnp.bfloat16,
                 batch_tile=512):
        if n_shared <= 0:
            raise ValueError("Shared dimensionality cannot be 0.")
        self.n_a, self.n_b = n_a, n_b
        self.n_shared = n_shared
        self.n_private_a, self.n_private_b = n_private_a, n_private_b

        # Per-network params (kept for the pure-JAX reference path).
        self.F_a,   key = _make_mlp(key, n_a, enc_layers, n_private_a)
        self.F_a2b, key = _make_mlp(key, n_a, enc_layers, n_shared)
        self.F_b2a, key = _make_mlp(key, n_b, enc_layers, n_shared)
        self.F_b,   key = _make_mlp(key, n_b, enc_layers, n_private_b)
        self.G_a,   key = _make_mlp(key, n_private_a + n_shared, dec_layers, n_a)
        self.G_b,   key = _make_mlp(key, n_private_b + n_shared, dec_layers, n_b)

        n_pa, n_pb, n_sh = n_private_a, n_private_b, n_shared
        L = n_pa + 2 * n_sh + n_pb
        out_w = _round_up(L + n_a + n_b, 128)

        enc_chain = _build_encoder_chain(
            [self.F_a, self.F_a2b, self.F_b2a, self.F_b],
            in_offsets=[0, 0, n_a, n_a], in_dims=[n_a, n_a, n_b, n_b],
            n_in_total=n_a + n_b, out_w=out_w)
        dec_chain = _build_decoder_chain(self.G_a, self.G_b,
                                         n_pa, n_pb, n_sh, n_a, n_b, out_w)

        # Weights in compute_dtype (bf16 by default, MXU-native); biases f32
        # (added after the f32 accumulation).
        flat = []
        for w, b in enc_chain + dec_chain:
            flat += [w.astype(compute_dtype), b.astype(jnp.float32)]
        self._flat = tuple(flat)

        flops_per_row = 2 * sum(int(w.shape[0]) * int(w.shape[1])
                                for w, _ in enc_chain + dec_chain)
        trans_per_row = 2 * sum(int(b.shape[1])
                                for _, b in enc_chain[:-1] + dec_chain[:-1])
        param_bytes = sum(int(p.size) * p.dtype.itemsize for p in flat)
        self._meta = (len(enc_chain), len(dec_chain), n_pa, n_pb, n_sh,
                      n_a, n_b, out_w, flops_per_row, trans_per_row,
                      param_bytes)

        self._fwd = jax.jit(functools.partial(
            _splice_forward, meta=self._meta, batch_tile=batch_tile,
            compute_dtype=compute_dtype))

    # fused-kernel forward
    def forward(self, x_a, x_b):
        return self._fwd(x_a, x_b, self._flat)

    # pure-JAX f32 reference (mirrors the original per-network structure)
    def forward_reference(self, x_a, x_b):
        def mlp(x, params):
            h = x
            n = len(params)
            for l, (w, b) in enumerate(params):
                h = h @ w + b
                if l < n - 1:
                    h = _carlos_plus(h)
            return h
        z_a = mlp(x_a, self.F_a)
        z_a2b = mlp(x_a, self.F_a2b)
        z_b2a = mlp(x_b, self.F_b2a)
        z_b = mlp(x_b, self.F_b)
        a_hat = mlp(jnp.concatenate([z_a, z_b2a], axis=1), self.G_a)
        b_hat = mlp(jnp.concatenate([z_b, z_a2b], axis=1), self.G_b)
        return z_a, z_b2a, z_a2b, z_b, a_hat, b_hat


if __name__ == "__main__":
    key = jax.random.PRNGKey(0)
    k_model, k_a, k_b = jax.random.split(key, 3)

    # Small, forward-consistent shapes.
    batch = 8
    n_a, n_b = 16, 12
    n_shared, n_private_a, n_private_b = 4, 3, 5
    enc_layers = [32, 32]
    dec_layers = [32, 32]

    x_a = jax.random.normal(k_a, (batch, n_a), jnp.float32)
    x_b = jax.random.normal(k_b, (batch, n_b), jnp.float32)

    # Default (perf) model: bf16 weights/inputs, f32 accumulation.
    model = SpliceCoreJax(k_model, n_a, n_b, n_shared, n_private_a,
                          n_private_b, enc_layers, dec_layers,
                          compute_dtype=jnp.bfloat16)
    # f32 variant of the same params for a tight structural-correctness check.
    model_f32 = SpliceCoreJax(k_model, n_a, n_b, n_shared, n_private_a,
                              n_private_b, enc_layers, dec_layers,
                              compute_dtype=jnp.float32)

    ref = model_f32.forward_reference(x_a, x_b)

    outs32 = jax.block_until_ready(model_f32.forward(x_a, x_b))
    outs16 = jax.block_until_ready(model.forward(x_a, x_b))

    z_a, z_b2a, z_a2b, z_b, a_hat, b_hat = outs16
    assert z_a.shape == (batch, n_private_a)
    assert z_b2a.shape == (batch, n_shared)
    assert z_a2b.shape == (batch, n_shared)
    assert z_b.shape == (batch, n_private_b)
    assert a_hat.shape == (batch, n_a)
    assert b_hat.shape == (batch, n_b)

    # Structural correctness (f32 kernel vs f32 reference).
    for got, want in zip(outs32, ref):
        assert jnp.allclose(got, want, atol=5e-3, rtol=5e-3), (
            float(jnp.max(jnp.abs(got - want))))
    # bf16 perf path within bf16 tolerance of the f32 reference.
    for got, want in zip(outs16, ref):
        assert jnp.allclose(got, want, atol=5e-2, rtol=5e-2), (
            float(jnp.max(jnp.abs(got - want))))

    print("KERNEL_OK")
</pallas_src>

<mosaic_0001>
module attributes {stable_mosaic.version = 11 : i64} {
  func.func @_splice_kernel(%arg0: i32, %arg1: memref<8x28xf32, #tpu.memory_space<vmem>>, %arg2: memref<28x128xf32, #tpu.memory_space<vmem>>, %arg3: memref<1x128xf32, #tpu.memory_space<vmem>>, %arg4: memref<128x128xf32, #tpu.memory_space<vmem>>, %arg5: memref<1x128xf32, #tpu.memory_space<vmem>>, %arg6: memref<128x128xf32, #tpu.memory_space<vmem>>, %arg7: memref<1x128xf32, #tpu.memory_space<vmem>>, %arg8: memref<128x64xf32, #tpu.memory_space<vmem>>, %arg9: memref<1x64xf32, #tpu.memory_space<vmem>>, %arg10: memref<64x64xf32, #tpu.memory_space<vmem>>, %arg11: memref<1x64xf32, #tpu.memory_space<vmem>>, %arg12: memref<64x128xf32, #tpu.memory_space<vmem>>, %arg13: memref<1x128xf32, #tpu.memory_space<vmem>>, %arg14: memref<8x128xf32, #tpu.memory_space<vmem>>) attributes {dimension_semantics = [#tpu.dimension_semantics<parallel>], iteration_bounds = array<i64: 1>, scalar_prefetch = 0 : i64, scratch_operands = 0 : i64, tpu.core_type = #tpu.core_type<tc>, window_params = [{transform_indices = @transform_0, window_bounds = array<i64: 8, 28>}, {pipeline_mode = #tpu.pipeline_mode<synchronous>, transform_indices = @transform_1, window_bounds = array<i64: 28, 128>}, {pipeline_mode = #tpu.pipeline_mode<synchronous>, transform_indices = @transform_2, window_bounds = array<i64: 1, 128>}, {pipeline_mode = #tpu.pipeline_mode<synchronous>, transform_indices = @transform_3, window_bounds = array<i64: 128, 128>}, {pipeline_mode = #tpu.pipeline_mode<synchronous>, transform_indices = @transform_4, window_bounds = array<i64: 1, 128>}, {pipeline_mode = #tpu.pipeline_mode<synchronous>, transform_indices = @transform_5, window_bounds = array<i64: 128, 128>}, {pipeline_mode = #tpu.pipeline_mode<synchronous>, transform_indices = @transform_6, window_bounds = array<i64: 1, 128>}, {pipeline_mode = #tpu.pipeline_mode<synchronous>, transform_indices = @transform_7, window_bounds = array<i64: 128, 64>}, {pipeline_mode = #tpu.pipeline_mode<synchronous>, transform_indices = @transform_8, window_bounds = array<i64: 1, 64>}, {pipeline_mode = #tpu.pipeline_mode<synchronous>, transform_indices = @transform_9, window_bounds = array<i64: 64, 64>}, {pipeline_mode = #tpu.pipeline_mode<synchronous>, transform_indices = @transform_10, window_bounds = array<i64: 1, 64>}, {pipeline_mode = #tpu.pipeline_mode<synchronous>, transform_indices = @transform_11, window_bounds = array<i64: 64, 128>}, {pipeline_mode = #tpu.pipeline_mode<synchronous>, transform_indices = @transform_12, window_bounds = array<i64: 1, 128>}, {transform_indices = @transform_13, window_bounds = array<i64: 8, 128>}]} {
    %c0 = arith.constant 0 : index
    %c0_0 = arith.constant 0 : index
    %0 = vector.load %arg1[%c0, %c0_0] : memref<8x28xf32, #tpu.memory_space<vmem>>, vector<8x28xf32>
    %c0_1 = arith.constant 0 : index
    %c0_2 = arith.constant 0 : index
    %1 = vector.load %arg2[%c0_1, %c0_2] : memref<28x128xf32, #tpu.memory_space<vmem>>, vector<28x128xf32>
    %cst = arith.constant dense<0.000000e+00> : vector<8x128xf32>
    %2 = tpu.matmul %0, %1, %cst {dimension_numbers = #tpu.dot_dimension_numbers<[1], [0], [0], [1], [0, 0, 1, 1], [], []>} : vector<8x28xf32>, vector<28x128xf32>, vector<8x128xf32> -> vector<8x128xf32>
    %c0_3 = arith.constant 0 : index
    %c0_4 = arith.constant 0 : index
    %3 = vector.load %arg3[%c0_3, %c0_4] : memref<1x128xf32, #tpu.memory_space<vmem>>, vector<1x128xf32>
    %4 = vector.broadcast %3 : vector<1x128xf32> to vector<8x128xf32>
    %5 = arith.addf %2, %4 : vector<8x128xf32>
    %cst_5 = arith.constant 0.000000e+00 : f32
    %6 = vector.broadcast %cst_5 : f32 to vector<8x128xf32>
    %7 = arith.maximumf %5, %6 : vector<8x128xf32>
    %8 = vector.broadcast %cst_5 : f32 to vector<8x128xf32>
    %9 = arith.subf %5, %8 : vector<8x128xf32>
    %10 = arith.cmpf one, %9, %9 : vector<8x128xf32>
    %11 = vector.broadcast %cst_5 : f32 to vector<8x128xf32>
    %12 = arith.addf %5, %11 : vector<8x128xf32>
    %13 = math.absf %9 : vector<8x128xf32>
    %cst_6 = arith.constant 0.000000e+00 : f32
    %14 = vector.broadcast %cst_6 : f32 to vector<8x128xf32>
    %15 = arith.subf %14, %13 : vector<8x128xf32>
    %16 = math.exp %15 : vector<8x128xf32>
    %17 = math.log1p %16 : vector<8x128xf32>
    %18 = arith.addf %7, %17 : vector<8x128xf32>
    %19 = arith.select %10, %12, %18 : vector<8x128xi1>, vector<8x128xf32>
    %cst_7 = arith.constant 0.693147182 : f32
    %20 = vector.broadcast %cst_7 : f32 to vector<8x128xf32>
    %21 = arith.subf %19, %20 : vector<8x128xf32>
    %cst_8 = arith.constant 2.000000e+00 : f32
    %22 = vector.broadcast %cst_8 : f32 to vector<8x128xf32>
    %23 = arith.mulf %22, %21 : vector<8x128xf32>
    %c0_9 = arith.constant 0 : index
    %c0_10 = arith.constant 0 : index
    %24 = vector.load %arg4[%c0_9, %c0_10] : memref<128x128xf32, #tpu.memory_space<vmem>>, vector<128x128xf32>
    %cst_11 = arith.constant dense<0.000000e+00> : vector<8x128xf32>
    %25 = tpu.matmul %23, %24, %cst_11 {dimension_numbers = #tpu.dot_dimension_numbers<[1], [0], [0], [1], [0, 0, 1, 1], [], []>} : vector<8x128xf32>, vector<128x128xf32>, vector<8x128xf32> -> vector<8x128xf32>
    %c0_12 = arith.constant 0 : index
    %c0_13 = arith.constant 0 : index
    %26 = vector.load %arg5[%c0_12, %c0_13] : memref<1x128xf32, #tpu.memory_space<vmem>>, vector<1x128xf32>
    %27 = vector.broadcast %26 : vector<1x128xf32> to vector<8x128xf32>
    %28 = arith.addf %25, %27 : vector<8x128xf32>
    %cst_14 = arith.constant 0.000000e+00 : f32
    %29 = vector.broadcast %cst_14 : f32 to vector<8x128xf32>
    %30 = arith.maximumf %28, %29 : vector<8x128xf32>
    %31 = vector.broadcast %cst_14 : f32 to vector<8x128xf32>
    %32 = arith.subf %28, %31 : vector<8x128xf32>
    %33 = arith.cmpf one, %32, %32 : vector<8x128xf32>
    %34 = vector.broadcast %cst_14 : f32 to vector<8x128xf32>
    %35 = arith.addf %28, %34 : vector<8x128xf32>
    %36 = math.absf %32 : vector<8x128xf32>
    %cst_15 = arith.constant 0.000000e+00 : f32
    %37 = vector.broadcast %cst_15 : f32 to vector<8x128xf32>
    %38 = arith.subf %37, %36 : vector<8x128xf32>
    %39 = math.exp %38 : vector<8x128xf32>
    %40 = math.log1p %39 : vector<8x128xf32>
    %41 = arith.addf %30, %40 : vector<8x128xf32>
    %42 = arith.select %33, %35, %41 : vector<8x128xi1>, vector<8x128xf32>
    %cst_16 = arith.constant 0.693147182 : f32
    %43 = vector.broadcast %cst_16 : f32 to vector<8x128xf32>
    %44 = arith.subf %42, %43 : vector<8x128xf32>
    %cst_17 = arith.constant 2.000000e+00 : f32
    %45 = vector.broadcast %cst_17 : f32 to vector<8x128xf32>
    %46 = arith.mulf %45, %44 : vector<8x128xf32>
    %c0_18 = arith.constant 0 : index
    %c0_19 = arith.constant 0 : index
    %47 = vector.load %arg6[%c0_18, %c0_19] : memref<128x128xf32, #tpu.memory_space<vmem>>, vector<128x128xf32>
    %cst_20 = arith.constant dense<0.000000e+00> : vector<8x128xf32>
    %48 = tpu.matmul %46, %47, %cst_20 {dimension_numbers = #tpu.dot_dimension_numbers<[1], [0], [0], [1], [0, 0, 1, 1], [], []>} : vector<8x128xf32>, vector<128x128xf32>, vector<8x128xf32> -> vector<8x128xf32>
    %c0_21 = arith.constant 0 : index
    %c0_22 = arith.constant 0 : index
    %49 = vector.load %arg7[%c0_21, %c0_22] : memref<1x128xf32, #tpu.memory_space<vmem>>, vector<1x128xf32>
    %50 = vector.broadcast %49 : vector<1x128xf32> to vector<8x128xf32>
    %51 = arith.addf %48, %50 : vector<8x128xf32>
    %c0_23 = arith.constant 0 : index
    %c0_24 = arith.constant 0 : index
    %52 = vector.load %arg8[%c0_23, %c0_24] : memref<128x64xf32, #tpu.memory_space<vmem>>, vector<128x64xf32>
    %cst_25 = arith.constant dense<0.000000e+00> : vector<8x64xf32>
    %53 = tpu.matmul %51, %52, %cst_25 {dimension_numbers = #tpu.dot_dimension_numbers<[1], [0], [0], [1], [0, 0, 1, 1], [], []>} : vector<8x128xf32>, vector<128x64xf32>, vector<8x64xf32> -> vector<8x64xf32>
    %c0_26 = arith.constant 0 : index
    %c0_27 = arith.constant 0 : index
    %54 = vector.load %arg9[%c0_26, %c0_27] : memref<1x64xf32, #tpu.memory_space<vmem>>, vector<1x64xf32>
    %55 = vector.broadcast %54 : vector<1x64xf32> to vector<8x64xf32>
    %56 = arith.addf %53, %55 : vector<8x64xf32>
    %cst_28 = arith.constant 0.000000e+00 : f32
    %57 = vector.broadcast %cst_28 : f32 to vector<8x64xf32>
    %58 = arith.maximumf %56, %57 : vector<8x64xf32>
    %59 = vector.broadcast %cst_28 : f32 to vector<8x64xf32>
    %60 = arith.subf %56, %59 : vector<8x64xf32>
    %61 = arith.cmpf one, %60, %60 : vector<8x64xf32>
    %62 = vector.broadcast %cst_28 : f32 to vector<8x64xf32>
    %63 = arith.addf %56, %62 : vector<8x64xf32>
    %64 = math.absf %60 : vector<8x64xf32>
    %cst_29 = arith.constant 0.000000e+00 : f32
    %65 = vector.broadcast %cst_29 : f32 to vector<8x64xf32>
    %66 = arith.subf %65, %64 : vector<8x64xf32>
    %67 = math.exp %66 : vector<8x64xf32>
    %68 = math.log1p %67 : vector<8x64xf32>
    %69 = arith.addf %58, %68 : vector<8x64xf32>
    %70 = arith.select %61, %63, %69 : vector<8x64xi1>, vector<8x64xf32>
    %cst_30 = arith.constant 0.693147182 : f32
    %71 = vector.broadcast %cst_30 : f32 to vector<8x64xf32>
    %72 = arith.subf %70, %71 : vector<8x64xf32>
    %cst_31 = arith.constant 2.000000e+00 : f32
    %73 = vector.broadcast %cst_31 : f32 to vector<8x64xf32>
    %74 = arith.mulf %73, %72 : vector<8x64xf32>
    %c0_32 = arith.constant 0 : index
    %c0_33 = arith.constant 0 : index
    %75 = vector.load %arg10[%c0_32, %c0_33] : memref<64x64xf32, #tpu.memory_space<vmem>>, vector<64x64xf32>
    %cst_34 = arith.constant dense<0.000000e+00> : vector<8x64xf32>
    %76 = tpu.matmul %74, %75, %cst_34 {dimension_numbers = #tpu.dot_dimension_numbers<[1], [0], [0], [1], [0, 0, 1, 1], [], []>} : vector<8x64xf32>, vector<64x64xf32>, vector<8x64xf32> -> vector<8x64xf32>
    %c0_35 = arith.constant 0 : index
    %c0_36 = arith.constant 0 : index
    %77 = vector.load %arg11[%c0_35, %c0_36] : memref<1x64xf32, #tpu.memory_space<vmem>>, vector<1x64xf32>
    %78 = vector.broadcast %77 : vector<1x64xf32> to vector<8x64xf32>
    %79 = arith.addf %76, %78 : vector<8x64xf32>
    %cst_37 = arith.constant 0.000000e+00 : f32
    %80 = vector.broadcast %cst_37 : f32 to vector<8x64xf32>
    %81 = arith.maximumf %79, %80 : vector<8x64xf32>
    %82 = vector.broadcast %cst_37 : f32 to vector<8x64xf32>
    %83 = arith.subf %79, %82 : vector<8x64xf32>
    %84 = arith.cmpf one, %83, %83 : vector<8x64xf32>
    %85 = vector.broadcast %cst_37 : f32 to vector<8x64xf32>
    %86 = arith.addf %79, %85 : vector<8x64xf32>
    %87 = math.absf %83 : vector<8x64xf32>
    %cst_38 = arith.constant 0.000000e+00 : f32
    %88 = vector.broadcast %cst_38 : f32 to vector<8x64xf32>
    %89 = arith.subf %88, %87 : vector<8x64xf32>
    %90 = math.exp %89 : vector<8x64xf32>
    %91 = math.log1p %90 : vector<8x64xf32>
    %92 = arith.addf %81, %91 : vector<8x64xf32>
    %93 = arith.select %84, %86, %92 : vector<8x64xi1>, vector<8x64xf32>
    %cst_39 = arith.constant 0.693147182 : f32
    %94 = vector.broadcast %cst_39 : f32 to vector<8x64xf32>
    %95 = arith.subf %93, %94 : vector<8x64xf32>
    %cst_40 = arith.constant 2.000000e+00 : f32
    %96 = vector.broadcast %cst_40 : f32 to vector<8x64xf32>
    %97 = arith.mulf %96, %95 : vector<8x64xf32>
    %c0_41 = arith.constant 0 : index
    %c0_42 = arith.constant 0 : index
    %98 = vector.load %arg12[%c0_41, %c0_42] : memref<64x128xf32, #tpu.memory_space<vmem>>, vector<64x128xf32>
    %cst_43 = arith.constant dense<0.000000e+00> : vector<8x128xf32>
    %99 = tpu.matmul %97, %98, %cst_43 {dimension_numbers = #tpu.dot_dimension_numbers<[1], [0], [0], [1], [0, 0, 1, 1], [], []>} : vector<8x64xf32>, vector<64x128xf32>, vector<8x128xf32> -> vector<8x128xf32>
    %c0_44 = arith.constant 0 : index
    %c0_45 = arith.constant 0 : index
    %100 = vector.load %arg13[%c0_44, %c0_45] : memref<1x128xf32, #tpu.memory_space<vmem>>, vector<1x128xf32>
    %101 = vector.broadcast %100 : vector<1x128xf32> to vector<8x128xf32>
    %102 = arith.addf %99, %101 : vector<8x128xf32>
    %103 = arith.addf %51, %102 : vector<8x128xf32>
    %c0_46 = arith.constant 0 : index
    %c0_47 = arith.constant 0 : index
    %104 = vector.load %arg14[%c0_46, %c0_47] : memref<8x128xf32, #tpu.memory_space<vmem>>, vector<8x128xf32>
    tpu.vector_store %arg14[%c0_46, %c0_47], %103 {strides = array<i32>} : memref<8x128xf32, #tpu.memory_space<vmem>>, vector<8x128xf32>,
    return
  }
  func.func @transform_0(%arg0: i32) -> (i32, i32) {
    %c0_i32 = arith.constant 0 : i32
    %c0_i32_0 = arith.constant 0 : i32
    return %arg0, %c0_i32 : i32, i32
  }
  func.func @transform_1(%arg0: i32) -> (i32, i32) {
    %c0_i32 = arith.constant 0 : i32
    %c0_i32_0 = arith.constant 0 : i32
    %c0_i32_1 = arith.constant 0 : i32
    return %c0_i32, %c0_i32_0 : i32, i32
  }
  func.func @transform_2(%arg0: i32) -> (i32, i32) {
    %c0_i32 = arith.constant 0 : i32
    %c0_i32_0 = arith.constant 0 : i32
    %c0_i32_1 = arith.constant 0 : i32
    return %c0_i32, %c0_i32_0 : i32, i32
  }
  func.func @transform_3(%arg0: i32) -> (i32, i32) {
    %c0_i32 = arith.constant 0 : i32
    %c0_i32_0 = arith.constant 0 : i32
    %c0_i32_1 = arith.constant 0 : i32
    return %c0_i32, %c0_i32_0 : i32, i32
  }
  func.func @transform_4(%arg0: i32) -> (i32, i32) {
    %c0_i32 = arith.constant 0 : i32
    %c0_i32_0 = arith.constant 0 : i32
    %c0_i32_1 = arith.constant 0 : i32
    return %c0_i32, %c0_i32_0 : i32, i32
  }
  func.func @transform_5(%arg0: i32) -> (i32, i32) {
    %c0_i32 = arith.constant 0 : i32
    %c0_i32_0 = arith.constant 0 : i32
    %c0_i32_1 = arith.constant 0 : i32
    return %c0_i32, %c0_i32_0 : i32, i32
  }
  func.func @transform_6(%arg0: i32) -> (i32, i32) {
    %c0_i32 = arith.constant 0 : i32
    %c0_i32_0 = arith.constant 0 : i32
    %c0_i32_1 = arith.constant 0 : i32
    return %c0_i32, %c0_i32_0 : i32, i32
  }
  func.func @transform_7(%arg0: i32) -> (i32, i32) {
    %c0_i32 = arith.constant 0 : i32
    %c0_i32_0 = arith.constant 0 : i32
    %c0_i32_1 = arith.constant 0 : i32
    return %c0_i32, %c0_i32_0 : i32, i32
  }
  func.func @transform_8(%arg0: i32) -> (i32, i32) {
    %c0_i32 = arith.constant 0 : i32
    %c0_i32_0 = arith.constant 0 : i32
    %c0_i32_1 = arith.constant 0 : i32
    return %c0_i32, %c0_i32_0 : i32, i32
  }
  func.func @transform_9(%arg0: i32) -> (i32, i32) {
    %c0_i32 = arith.constant 0 : i32
    %c0_i32_0 = arith.constant 0 : i32
    %c0_i32_1 = arith.constant 0 : i32
    return %c0_i32, %c0_i32_0 : i32, i32
  }
  func.func @transform_10(%arg0: i32) -> (i32, i32) {
    %c0_i32 = arith.constant 0 : i32
    %c0_i32_0 = arith.constant 0 : i32
    %c0_i32_1 = arith.constant 0 : i32
    return %c0_i32, %c0_i32_0 : i32, i32
  }
  func.func @transform_11(%arg0: i32) -> (i32, i32) {
    %c0_i32 = arith.constant 0 : i32
    %c0_i32_0 = arith.constant 0 : i32
    %c0_i32_1 = arith.constant 0 : i32
    return %c0_i32, %c0_i32_0 : i32, i32
  }
  func.func @transform_12(%arg0: i32) -> (i32, i32) {
    %c0_i32 = arith.constant 0 : i32
    %c0_i32_0 = arith.constant 0 : i32
    %c0_i32_1 = arith.constant 0 : i32
    return %c0_i32, %c0_i32_0 : i32, i32
  }
  func.func @transform_13(%arg0: i32) -> (i32, i32) {
    %c0_i32 = arith.constant 0 : i32
    %c0_i32_0 = arith.constant 0 : i32
    return %arg0, %c0_i32 : i32, i32
  }
}

</mosaic_0001>

<llo_original>
// kernel: _splice_forward.1
$region0: #{_splice_forward.1}
  #allocation0 [shape = 'u32[]', space=smem, size = 0x4, offset = 0x4, fixed_abs, tag = 'smem constant byte address 0x4 - core index']
  #allocation1 [shape = 'u32[144,128]{1,0:T(1,128)}', space=vmem, size = 0x12000, scoped, tag = 'internal scratch']
  %s0 = inlined_call_operand.vmem [shape: f32[8,28], index: 0, kind: input, shape index: {}]
  %s1 = inlined_call_operand.hbm [shape: f32[28,128], index: 1, kind: input, shape index: {}]
  %s2 = inlined_call_operand.vmem [shape: f32[1,128], index: 2, kind: input, shape index: {}]
  %s3 = inlined_call_operand.vmem [shape: f32[128,128], index: 3, kind: input, shape index: {}]
  %s4 = inlined_call_operand.hbm [shape: f32[1,128], index: 4, kind: input, shape index: {}]
  %s5 = inlined_call_operand.hbm [shape: f32[128,128], index: 5, kind: input, shape index: {}]
  %s6 = inlined_call_operand.hbm [shape: f32[1,128], index: 6, kind: input, shape index: {}]
  %s7 = inlined_call_operand.vmem [shape: f32[128,64], index: 7, kind: input, shape index: {}]
  %s8 = inlined_call_operand.hbm [shape: f32[1,64], index: 8, kind: input, shape index: {}]
  %s9 = inlined_call_operand.vmem [shape: f32[64,64], index: 9, kind: input, shape index: {}]
  %s10 = inlined_call_operand.hbm [shape: f32[1,64], index: 10, kind: input, shape index: {}]
  %s11 = inlined_call_operand.vmem [shape: f32[64,128], index: 11, kind: input, shape index: {}]
  %s12 = inlined_call_operand.vmem [shape: f32[1,128], index: 12, kind: input, shape index: {}]
  %s13 = inlined_call_operand.vmem [shape: f32[8,128], index: 13, kind: output, shape index: {}]
  %s14 = sld [smem:[#allocation0]]
  $region86: #{_splice_forward.1} parent=0
    _
  %s16 = ssub.s32 1, %s14
  %s17 = scalar_select 0, %s16, %s14
  $region1: #{_splice_forward.1} parent=0
    #allocation2 [shape = 'u8[16384]{0}', space=vmem, size = 0x4000, scoped, tag = 'input window, operand 1, single buffered']
    #allocation3 [shape = 's32[1]{0}', space=sflag, size = 0x4, scoped, tag = 'scoped memory for _splice_forward.1']
    #allocation4 [shape = 'u8[512]{0}', space=vmem, size = 0x400, scoped, tag = 'input window, operand 4, single buffered']
    #allocation5 [shape = 's32[1]{0}', space=sflag, size = 0x4, scoped, tag = 'scoped memory for _splice_forward.1']
    #allocation6 [shape = 'u8[65536]{0}', space=vmem, size = 0x10000, scoped, tag = 'input window, operand 5, single buffered']
    #allocation7 [shape = 'u8[512]{0}', space=vmem, size = 0x400, scoped, tag = 'input window, operand 6, single buffered']
    #allocation8 [shape = 's32[1]{0}', space=sflag, size = 0x4, scoped, tag = 'scoped memory for _splice_forward.1']
    #allocation9 [shape = 'u8[512]{0}', space=vmem, size = 0x400, scoped, tag = 'input window, operand 8, single buffered']
    #allocation10 [shape = 'u8[512]{0}', space=vmem, size = 0x400, scoped, tag = 'input window, operand 10, single buffered']
    #allocation11 [shape = 's32[1]{0}', space=sflag, size = 0x4, scoped, tag = 'scoped memory for _splice_forward.1']
    %18 = vsyncpa [#allocation3], 0
    %19 = vsyncpa [#allocation5], 0
    %20 = vsyncpa [#allocation8], 0
    %21 = vsyncpa [#allocation11], 0
    // Predicated region
    $region2: #{_splice_forward.1} parent=1 // pred_check
      _
    $region3: #{_splice_forward.1} parent=1 // pred_check_branch
      %23 = sbr.rel (0) target = $region5
    $region4: #{_splice_forward.1} parent=1 // pred_region
      _
    $region5: #{_splice_forward.1} parent=1 // pred_fallthru
      _
    // Predicated region
    $region6: #{_splice_forward.1} parent=1 // pred_check
      _
    $region7: #{_splice_forward.1} parent=1 // pred_check_branch
      %25 = sbr.rel (0) target = $region9
    $region8: #{_splice_forward.1} parent=1 // pred_region
      %s27 = ssub.s32 512, 512
      %28 = vsyncadd [#allocation3], %s27
      %s29 = sshll.u32 [#allocation2], 4
      %s30 = int_to_ptr.vmem [resolvable:$true] %s29
      %35 = dma.hbm_to_vmem [thread:$0]  %s1, 512, %s30, [#allocation3], 128, 128, 8
    $region9: #{_splice_forward.1} parent=1 // pred_fallthru
      _
    // Predicated region
    $region10: #{_splice_forward.1} parent=1 // pred_check
      _
    $region11: #{_splice_forward.1} parent=1 // pred_check_branch
      %37 = sbr.rel (0) target = $region13
    $region12: #{_splice_forward.1} parent=1 // pred_region
      _
    $region13: #{_splice_forward.1} parent=1 // pred_fallthru
      _
    // Predicated region
    $region14: #{_splice_forward.1} parent=1 // pred_check
      _
    $region15: #{_splice_forward.1} parent=1 // pred_check_branch
      %39 = sbr.rel (0) target = $region17
    $region16: #{_splice_forward.1} parent=1 // pred_region
      _
    $region17: #{_splice_forward.1} parent=1 // pred_fallthru
      _
    // Predicated region
    $region18: #{_splice_forward.1} parent=1 // pred_check
      _
    $region19: #{_splice_forward.1} parent=1 // pred_check_branch
      %41 = sbr.rel (0) target = $region21
    $region20: #{_splice_forward.1} parent=1 // pred_region
      %s43 = ssub.s32 16, 16
      %44 = vsyncadd [#allocation5], %s43
      %s46 = sshll.u32 [#allocation4], 4
      %s47 = int_to_ptr.vmem [resolvable:$true] %s46
      %49 = dma.hbm_to_vmem [thread:$0]  %s4, 16, %s47, [#allocation5]
    $region21: #{_splice_forward.1} parent=1 // pred_fallthru
      _
    // Predicated region
    $region22: #{_splice_forward.1} parent=1 // pred_check
      _
    $region23: #{_splice_forward.1} parent=1 // pred_check_branch
      %51 = sbr.rel (0) target = $region25
    $region24: #{_splice_forward.1} parent=1 // pred_region
      %s53 = ssub.s32 2048, 2048
      %54 = vsyncadd [#allocation5], %s53
      %s55 = sshll.u32 [#allocation6], 4
      %s56 = int_to_ptr.vmem [resolvable:$true] %s55
      %61 = dma.hbm_to_vmem [thread:$0]  %s5, 2048, %s56, [#allocation5], 128, 128, 8
    $region25: #{_splice_forward.1} parent=1 // pred_fallthru
      _
    // Predicated region
    $region26: #{_splice_forward.1} parent=1 // pred_check
      _
    $region27: #{_splice_forward.1} parent=1 // pred_check_branch
      %63 = sbr.rel (0) target = $region29
    $region28: #{_splice_forward.1} parent=1 // pred_region
      %s65 = ssub.s32 16, 16
      %66 = vsyncadd [#allocation8], %s65
      %s68 = sshll.u32 [#allocation7], 4
      %s69 = int_to_ptr.vmem [resolvable:$true] %s68
      %71 = dma.hbm_to_vmem [thread:$0]  %s6, 16, %s69, [#allocation8]
    $region29: #{_splice_forward.1} parent=1 // pred_fallthru
      _
    // Predicated region
    $region30: #{_splice_forward.1} parent=1 // pred_check
      _
    $region31: #{_splice_forward.1} parent=1 // pred_check_branch
      %73 = sbr.rel (0) target = $region33
    $region32: #{_splice_forward.1} parent=1 // pred_region
      _
    $region33: #{_splice_forward.1} parent=1 // pred_fallthru
      _
    // Predicated region
    $region34: #{_splice_forward.1} parent=1 // pred_check
      _
    $region35: #{_splice_forward.1} parent=1 // pred_check_branch
      %75 = sbr.rel (0) target = $region37
    $region36: #{_splice_forward.1} parent=1 // pred_region
      %s77 = ssub.s32 16, 16
      %78 = vsyncadd [#allocation8], %s77
      %s80 = sshll.u32 [#allocation9], 4
      %s81 = int_to_ptr.vmem [resolvable:$true] %s80
      %83 = dma.hbm_to_vmem [thread:$0]  %s8, 16, %s81, [#allocation8]
    $region37: #{_splice_forward.1} parent=1 // pred_fallthru
      _
    // Predicated region
    $region38: #{_splice_forward.1} parent=1 // pred_check
      _
    $region39: #{_splice_forward.1} parent=1 // pred_check_branch
      %85 = sbr.rel (0) target = $region41
    $region40: #{_splice_forward.1} parent=1 // pred_region
      _
    $region41: #{_splice_forward.1} parent=1 // pred_fallthru
      _
    // Predicated region
    $region42: #{_splice_forward.1} parent=1 // pred_check
      _
    $region43: #{_splice_forward.1} parent=1 // pred_check_branch
      %87 = sbr.rel (0) target = $region45
    $region44: #{_splice_forward.1} parent=1 // pred_region
      %s89 = ssub.s32 16, 16
      %90 = vsyncadd [#allocation11], %s89
      %s92 = sshll.u32 [#allocation10], 4
      %s93 = int_to_ptr.vmem [resolvable:$true] %s92
      %95 = dma.hbm_to_vmem [thread:$0]  %s10, 16, %s93, [#allocation11]
    $region45: #{_splice_forward.1} parent=1 // pred_fallthru
      _
    // Predicated region
    $region46: #{_splice_forward.1} parent=1 // pred_check
      _
    $region47: #{_splice_forward.1} parent=1 // pred_check_branch
      %97 = sbr.rel (0) target = $region49
    $region48: #{_splice_forward.1} parent=1 // pred_region
      _
    $region49: #{_splice_forward.1} parent=1 // pred_fallthru
      _
    // Predicated region
    $region50: #{_splice_forward.1} parent=1 // pred_check
      _
    $region51: #{_splice_forward.1} parent=1 // pred_check_branch
      %99 = sbr.rel (0) target = $region53
    $region52: #{_splice_forward.1} parent=1 // pred_region
      _
    $region53: #{_splice_forward.1} parent=1 // pred_fallthru
      _
    // Predicated region
    $region54: #{_splice_forward.1} parent=1 // pred_check
      _
    $region55: #{_splice_forward.1} parent=1 // pred_check_branch
      %101 = sbr.rel (0) target = $region57
    $region56: #{_splice_forward.1} parent=1 // pred_region
      %102 = dma.done [#allocation3], 512
    $region57: #{_splice_forward.1} parent=1 // pred_fallthru
      _
    // Predicated region
    $region58: #{_splice_forward.1} parent=1 // pred_check
      _
    $region59: #{_splice_forward.1} parent=1 // pred_check_branch
      %104 = sbr.rel (0) target = $region61
    $region60: #{_splice_forward.1} parent=1 // pred_region
      %105 = dma.done [#allocation5], 16
    $region61: #{_splice_forward.1} parent=1 // pred_fallthru
      _
    // Predicated region
    $region62: #{_splice_forward.1} parent=1 // pred_check
      _
    $region63: #{_splice_forward.1} parent=1 // pred_check_branch
      %107 = sbr.rel (0) target = $region65
    $region64: #{_splice_forward.1} parent=1 // pred_region
      %108 = dma.done [#allocation5], 2048
    $region65: #{_splice_forward.1} parent=1 // pred_fallthru
      _
    // Predicated region
    $region66: #{_splice_forward.1} parent=1 // pred_check
      _
    $region67: #{_splice_forward.1} parent=1 // pred_check_branch
      %110 = sbr.rel (0) target = $region69
    $region68: #{_splice_forward.1} parent=1 // pred_region
      %111 = dma.done [#allocation8], 16
    $region69: #{_splice_forward.1} parent=1 // pred_fallthru
      _
    // Predicated region
    $region70: #{_splice_forward.1} parent=1 // pred_check
      _
    $region71: #{_splice_forward.1} parent=1 // pred_check_branch
      %113 = sbr.rel (0) target = $region73
    $region72: #{_splice_forward.1} parent=1 // pred_region
      %114 = dma.done [#allocation8], 16
    $region73: #{_splice_forward.1} parent=1 // pred_fallthru
      _
    // Predicated region
    $region74: #{_splice_forward.1} parent=1 // pred_check
      _
    $region75: #{_splice_forward.1} parent=1 // pred_check_branch
      %116 = sbr.rel (0) target = $region77
    $region76: #{_splice_forward.1} parent=1 // pred_region
      %117 = dma.done [#allocation11], 16
    $region77: #{_splice_forward.1} parent=1 // pred_fallthru
      _
    %v118 = vld [vmem:[%s0] sm:$0xff]
    %v119 = vld [vmem:[#allocation2] sm:$0xff]
    %v120 = vld [vmem:[#allocation2 + $0x8] sm:$0xff]
    %v121 = vld [vmem:[#allocation2 + $0x10] sm:$0xff]
    %v122 = vld [vmem:[#allocation2 + $0x18] sm:$0xf]
    %v123 = vld [vmem:[%s2] sm:$0x1]
    %v125 = vlaneseq
    %v126 = vshrl.u32 %v125, 7
    %v127 = vsub.s32 0, %v126
    %v128 = vrot.slane %v123, %v127
    %vm130 = vcmask 228352
    %v132 = vsel %vm130, %v118, 0
    %vm134 = vcmask 1043456
    %v136 = vsel %vm134, %v122, 0
    %138 = vmatprep.subr.mxu0 0.0
    %139 = vmatpush1.msra.mxu0 %v119
    %140 = vmatprep.subr.mxu0 0.0
    %141 = vmatpush1.msra.mxu0 %v120
    %142 = vmatprep.subr.mxu0 0.0
    %143 = vmatpush1.msra.mxu0 %v121
    %144 = vmatprep.subr.mxu0 0.0
    %145 = vmatpush1.msra.mxu0 %v136
    %146 = vmatprep.subr.mxu0 0.0
    %147 = vmatpush1.msra.mxu0 0.0
    %148 = vmatprep.subr.mxu0 0.0
    %149 = vmatpush1.msra.mxu0 0.0
    %150 = vmatprep.subr.mxu0 0.0
    %151 = vmatpush1.msra.mxu0 0.0
    %152 = vmatprep.subr.mxu0 0.0
    %153 = vmatpush1.msra.mxu0 0.0
    %154 = vmatprep.subr.mxu0 0.0
    %155 = vmatpush1.msra.mxu0 0.0
    %156 = vmatprep.subr.mxu0 0.0
    %157 = vmatpush1.msra.mxu0 0.0
    %158 = vmatprep.subr.mxu0 0.0
    %159 = vmatpush1.msra.mxu0 0.0
    %160 = vmatprep.subr.mxu0 0.0
    %161 = vmatpush1.msra.mxu0 0.0
    %162 = vmatprep.subr.mxu0 0.0
    %163 = vmatpush1.msra.mxu0 0.0
    %164 = vmatprep.subr.mxu0 0.0
    %165 = vmatpush1.msra.mxu0 0.0
    %166 = vmatprep.subr.mxu0 0.0
    %167 = vmatpush1.msra.mxu0 0.0
    %168 = vmatprep.subr.mxu0 0.0
    %169 = vmatpush1.msra.mxu0 0.0
    %170 = vmatprep.subr.mxu0 0.0
    %171 = vmatpush1.msra.mxu0 0.0
    %172 = vmatprep.subr.mxu0 0.0
    %173 = vmatpush1.msra.mxu0 0.0
    %174 = vmatprep.subr.mxu0 0.0
    %175 = vmatpush1.msra.mxu0 0.0
    %176 = vmatprep.subr.mxu0 0.0
    %177 = vmatpush1.msra.mxu0 0.0
    %178 = vmatprep.subr.mxu0 0.0
    %179 = vmatpush1.msra.mxu0 0.0
    %180 = vmatprep.subr.mxu0 0.0
    %181 = vmatpush1.msra.mxu0 0.0
    %182 = vmatprep.subr.mxu0 0.0
    %183 = vmatpush1.msra.mxu0 0.0
    %184 = vmatprep.subr.mxu0 0.0
    %185 = vmatpush1.msra.mxu0 0.0
    %186 = vmatprep.subr.mxu0 0.0
    %187 = vmatpush1.msra.mxu0 0.0
    %188 = vmatprep.subr.mxu0 0.0
    %189 = vmatpush1.msra.mxu0 0.0
    %190 = vmatprep.subr.mxu0 0.0
    %191 = vmatpush1.msra.mxu0 0.0
    %192 = vmatprep.subr.mxu0 0.0
    %193 = vmatpush1.msra.mxu0 0.0
    %194 = vmatprep.subr.mxu0 0.0
    %195 = vmatpush1.msra.mxu0 0.0
    %196 = vmatprep.subr.mxu0 0.0
    %197 = vmatpush1.msra.mxu0 0.0
    %198 = vmatprep.subr.mxu0 0.0
    %199 = vmatpush1.msra.mxu0 0.0
    %200 = vmatprep.subr.mxu0 0.0
    %201 = vmatpush1.msra.mxu0 0.0
    %202 = vmatprep.mubr.f32.mxu0 0.0
    %203 = vmatmul.mubr.f32.gmra.mrb[0].mxu0 %v132
    %v204 = vpop.f32.mrb[0].mxu0
    %v205 = vadd.f32 %v128, %v204
    %v206 = vpop.f32.mrb[0].mxu0
    %207 = vdwg.mxu0
    %v208 = vmax.f32 %v205, 0.0
    %vm209 = vcmp.ne.f32.partialorder %v205, %v205
    %v210 = vadd.f32 %v205, 0.0
    %v211 = vand.u32 2147483647, %v205
    %v212 = vsub.f32 0.0, %v211
    %v213 = vmul.f32 %v212, 1.442695
    %v214 = vpow.pop %v213
    %v215 = vadd.f32 %v214, 1.0
    %v216 = vlog2.pop %v215
    %v217 = vmul.f32 %v216, 0.6931472
    %v218 = vmul.f32 -0.5, %v214
    %v219 = vadd.f32 %v218, 1.0
    %v220 = vmul.f32 %v219, %v214
    %v221 = vand.u32 2147483647, %v214
    %vm222 = vcmp.lt.f32.partialorder %v221, 0.0004427343
    %v223 = vsel %vm222, %v220, %v217
    %v224 = vadd.f32 %v208, %v223
    %v225 = vsel %vm209, %v210, %v224
    %v226 = vsub.f32 %v225, 0.6931472
    %v227 = vmul.f32 %v226, 2.0
    %v228 = vld [vmem:[%s3] sm:$0xff]
    %v229 = vld [vmem:[%s3 + $0x8] sm:$0xff]
    %v230 = vld [vmem:[%s3 + $0x10] sm:$0xff]
    %v231 = vld [vmem:[%s3 + $0x18] sm:$0xff]
    %v232 = vld [vmem:[%s3 + $0x20] sm:$0xff]
    %v233 = vld [vmem:[%s3 + $0x28] sm:$0xff]
    %v234 = vld [vmem:[%s3 + $0x30] sm:$0xff]
    %v235 = vld [vmem:[%s3 + $0x38] sm:$0xff]
    %v236 = vld [vmem:[%s3 + $0x40] sm:$0xff]
    %v237 = vld [vmem:[%s3 + $0x48] sm:$0xff]
    %v238 = vld [vmem:[%s3 + $0x50] sm:$0xff]
    %v239 = vld [vmem:[%s3 + $0x58] sm:$0xff]
    %v240 = vld [vmem:[%s3 + $0x60] sm:$0xff]
    %v241 = vld [vmem:[%s3 + $0x68] sm:$0xff]
    %v242 = vld [vmem:[%s3 + $0x70] sm:$0xff]
    %v243 = vld [vmem:[%s3 + $0x78] sm:$0xff]
    %v244 = vld [vmem:[#allocation4] sm:$0x1]
    %v246 = vlaneseq
    %v247 = vshrl.u32 %v246, 7
    %v248 = vsub.s32 0, %v247
    %v249 = vrot.slane %v244, %v248
    %251 = vmatprep.subr.mxu0 0.0
    %252 = vmatpush1.msra.mxu0 %v228
    %253 = vmatprep.subr.mxu0 0.0
    %254 = vmatpush1.msra.mxu0 %v229
    %255 = vmatprep.subr.mxu0 0.0
    %256 = vmatpush1.msra.mxu0 %v230
    %257 = vmatprep.subr.mxu0 0.0
    %258 = vmatpush1.msra.mxu0 %v231
    %259 = vmatprep.subr.mxu0 0.0
    %260 = vmatpush1.msra.mxu0 %v232
    %261 = vmatprep.subr.mxu0 0.0
    %262 = vmatpush1.msra.mxu0 %v233
    %263 = vmatprep.subr.mxu0 0.0
    %264 = vmatpush1.msra.mxu0 %v234
    %265 = vmatprep.subr.mxu0 0.0
    %266 = vmatpush1.msra.mxu0 %v235
    %267 = vmatprep.subr.mxu0 0.0
    %268 = vmatpush1.msra.mxu0 %v236
    %269 = vmatprep.subr.mxu0 0.0
    %270 = vmatpush1.msra.mxu0 %v237
    %271 = vmatprep.subr.mxu0 0.0
    %272 = vmatpush1.msra.mxu0 %v238
    %273 = vmatprep.subr.mxu0 0.0
    %274 = vmatpush1.msra.mxu0 %v239
    %275 = vmatprep.subr.mxu0 0.0
    %276 = vmatpush1.msra.mxu0 %v240
    %277 = vmatprep.subr.mxu0 0.0
    %278 = vmatpush1.msra.mxu0 %v241
    %279 = vmatprep.subr.mxu0 0.0
    %280 = vmatpush1.msra.mxu0 %v242
    %281 = vmatprep.subr.mxu0 0.0
    %282 = vmatpush1.msra.mxu0 %v243
    %283 = vmatprep.subr.mxu0 0.0
    %284 = vmatpush1.msra.mxu0 0.0
    %285 = vmatprep.subr.mxu0 0.0
    %286 = vmatpush1.msra.mxu0 0.0
    %287 = vmatprep.subr.mxu0 0.0
    %288 = vmatpush1.msra.mxu0 0.0
    %289 = vmatprep.subr.mxu0 0.0
    %290 = vmatpush1.msra.mxu0 0.0
    %291 = vmatprep.subr.mxu0 0.0
    %292 = vmatpush1.msra.mxu0 0.0
    %293 = vmatprep.subr.mxu0 0.0
    %294 = vmatpush1.msra.mxu0 0.0
    %295 = vmatprep.subr.mxu0 0.0
    %296 = vmatpush1.msra.mxu0 0.0
    %297 = vmatprep.subr.mxu0 0.0
    %298 = vmatpush1.msra.mxu0 0.0
    %299 = vmatprep.subr.mxu0 0.0
    %300 = vmatpush1.msra.mxu0 0.0
    %301 = vmatprep.subr.mxu0 0.0
    %302 = vmatpush1.msra.mxu0 0.0
    %303 = vmatprep.subr.mxu0 0.0
    %304 = vmatpush1.msra.mxu0 0.0
    %305 = vmatprep.subr.mxu0 0.0
    %306 = vmatpush1.msra.mxu0 0.0
    %307 = vmatprep.subr.mxu0 0.0
    %308 = vmatpush1.msra.mxu0 0.0
    %309 = vmatprep.subr.mxu0 0.0
    %310 = vmatpush1.msra.mxu0 0.0
    %311 = vmatprep.subr.mxu0 0.0
    %312 = vmatpush1.msra.mxu0 0.0
    %313 = vmatprep.subr.mxu0 0.0
    %314 = vmatpush1.msra.mxu0 0.0
    %315 = vmatprep.mubr.f32.mxu0 0.0
    %316 = vmatmul.mubr.f32.gmra.mrb[0].mxu0 %v227
    %v317 = vpop.f32.mrb[0].mxu0
    %v318 = vadd.f32 %v249, %v317
    %v319 = vpop.f32.mrb[0].mxu0
    %320 = vdwg.mxu0
    %v321 = vmax.f32 %v318, 0.0
    %vm322 = vcmp.ne.f32.partialorder %v318, %v318
    %v323 = vadd.f32 %v318, 0.0
    %v324 = vand.u32 2147483647, %v318
    %v325 = vsub.f32 0.0, %v324
    %v326 = vmul.f32 %v325, 1.442695
    %v327 = vpow.pop %v326
    %v328 = vadd.f32 %v327, 1.0
    %v329 = vlog2.pop %v328
    %v330 = vmul.f32 %v329, 0.6931472
    %v331 = vmul.f32 -0.5, %v327
    %v332 = vadd.f32 %v331, 1.0
    %v333 = vmul.f32 %v332, %v327
    %v334 = vand.u32 2147483647, %v327
    %vm335 = vcmp.lt.f32.partialorder %v334, 0.0004427343
    %v336 = vsel %vm335, %v333, %v330
    %v337 = vadd.f32 %v321, %v336
    %v338 = vsel %vm322, %v323, %v337
    %v339 = vsub.f32 %v338, 0.6931472
    %v340 = vmul.f32 %v339, 2.0
    %v341 = vld [vmem:[#allocation6] sm:$0xff]
    %v342 = vld [vmem:[#allocation6 + $0x8] sm:$0xff]
    %v343 = vld [vmem:[#allocation6 + $0x10] sm:$0xff]
    %v344 = vld [vmem:[#allocation6 + $0x18] sm:$0xff]
    %v345 = vld [vmem:[#allocation6 + $0x20] sm:$0xff]
    %v346 = vld [vmem:[#allocation6 + $0x28] sm:$0xff]
    %v347 = vld [vmem:[#allocation6 + $0x30] sm:$0xff]
    %v348 = vld [vmem:[#allocation6 + $0x38] sm:$0xff]
    %v349 = vld [vmem:[#allocation6 + $0x40] sm:$0xff]
    %v350 = vld [vmem:[#allocation6 + $0x48] sm:$0xff]
    %v351 = vld [vmem:[#allocation6 + $0x50] sm:$0xff]
    %v352 = vld [vmem:[#allocation6 + $0x58] sm:$0xff]
    %v353 = vld [vmem:[#allocation6 + $0x60] sm:$0xff]
    %v354 = vld [vmem:[#allocation6 + $0x68] sm:$0xff]
    %v355 = vld [vmem:[#allocation6 + $0x70] sm:$0xff]
    %v356 = vld [vmem:[#allocation6 + $0x78] sm:$0xff]
    %v357 = vld [vmem:[#allocation7] sm:$0x1]
    %v359 = vlaneseq
    %v360 = vshrl.u32 %v359, 7
    %v361 = vsub.s32 0, %v360
    %v362 = vrot.slane %v357, %v361
    %364 = vmatprep.subr.mxu0 0.0
    %365 = vmatpush1.msra.mxu0 %v341
    %366 = vmatprep.subr.mxu0 0.0
    %367 = vmatpush1.msra.mxu0 %v342
    %368 = vmatprep.subr.mxu0 0.0
    %369 = vmatpush1.msra.mxu0 %v343
    %370 = vmatprep.subr.mxu0 0.0
    %371 = vmatpush1.msra.mxu0 %v344
    %372 = vmatprep.subr.mxu0 0.0
    %373 = vmatpush1.msra.mxu0 %v345
    %374 = vmatprep.subr.mxu0 0.0
    %375 = vmatpush1.msra.mxu0 %v346
    %376 = vmatprep.subr.mxu0 0.0
    %377 = vmatpush1.msra.mxu0 %v347
    %378 = vmatprep.subr.mxu0 0.0
    %379 = vmatpush1.msra.mxu0 %v348
    %380 = vmatprep.subr.mxu0 0.0
    %381 = vmatpush1.msra.mxu0 %v349
    %382 = vmatprep.subr.mxu0 0.0
    %383 = vmatpush1.msra.mxu0 %v350
    %384 = vmatprep.subr.mxu0 0.0
    %385 = vmatpush1.msra.mxu0 %v351
    %386 = vmatprep.subr.mxu0 0.0
    %387 = vmatpush1.msra.mxu0 %v352
    %388 = vmatprep.subr.mxu0 0.0
    %389 = vmatpush1.msra.mxu0 %v353
    %390 = vmatprep.subr.mxu0 0.0
    %391 = vmatpush1.msra.mxu0 %v354
    %392 = vmatprep.subr.mxu0 0.0
    %393 = vmatpush1.msra.mxu0 %v355
    %394 = vmatprep.subr.mxu0 0.0
    %395 = vmatpush1.msra.mxu0 %v356
    %396 = vmatprep.subr.mxu0 0.0
    %397 = vmatpush1.msra.mxu0 0.0
    %398 = vmatprep.subr.mxu0 0.0
    %399 = vmatpush1.msra.mxu0 0.0
    %400 = vmatprep.subr.mxu0 0.0
    %401 = vmatpush1.msra.mxu0 0.0
    %402 = vmatprep.subr.mxu0 0.0
    %403 = vmatpush1.msra.mxu0 0.0
    %404 = vmatprep.subr.mxu0 0.0
    %405 = vmatpush1.msra.mxu0 0.0
    %406 = vmatprep.subr.mxu0 0.0
    %407 = vmatpush1.msra.mxu0 0.0
    %408 = vmatprep.subr.mxu0 0.0
    %409 = vmatpush1.msra.mxu0 0.0
    %410 = vmatprep.subr.mxu0 0.0
    %411 = vmatpush1.msra.mxu0 0.0
    %412 = vmatprep.subr.mxu0 0.0
    %413 = vmatpush1.msra.mxu0 0.0
    %414 = vmatprep.subr.mxu0 0.0
    %415 = vmatpush1.msra.mxu0 0.0
    %416 = vmatprep.subr.mxu0 0.0
    %417 = vmatpush1.msra.mxu0 0.0
    %418 = vmatprep.subr.mxu0 0.0
    %419 = vmatpush1.msra.mxu0 0.0
    %420 = vmatprep.subr.mxu0 0.0
    %421 = vmatpush1.msra.mxu0 0.0
    %422 = vmatprep.subr.mxu0 0.0
    %423 = vmatpush1.msra.mxu0 0.0
    %424 = vmatprep.subr.mxu0 0.0
    %425 = vmatpush1.msra.mxu0 0.0
    %426 = vmatprep.subr.mxu0 0.0
    %427 = vmatpush1.msra.mxu0 0.0
    %428 = vmatprep.mubr.f32.mxu0 0.0
    %429 = vmatmul.mubr.f32.gmra.mrb[0].mxu0 %v340
    %v430 = vpop.f32.mrb[0].mxu0
    %v431 = vadd.f32 %v362, %v430
    %v432 = vpop.f32.mrb[0].mxu0
    %433 = vdwg.mxu0
    %v434 = vld [vmem:[%s7] sm:$0xff]
    %v435 = vld [vmem:[%s7 + $0x8] sm:$0xff]
    %v436 = vld [vmem:[%s7 + $0x10] sm:$0xff]
    %v437 = vld [vmem:[%s7 + $0x18] sm:$0xff]
    %v438 = vld [vmem:[%s7 + $0x20] sm:$0xff]
    %v439 = vld [vmem:[%s7 + $0x28] sm:$0xff]
    %v440 = vld [vmem:[%s7 + $0x30] sm:$0xff]
    %v441 = vld [vmem:[%s7 + $0x38] sm:$0xff]
    %v442 = vld [vmem:[%s7 + $0x40] sm:$0xff]
    %v443 = vld [vmem:[%s7 + $0x48] sm:$0xff]
    %v444 = vld [vmem:[%s7 + $0x50] sm:$0xff]
    %v445 = vld [vmem:[%s7 + $0x58] sm:$0xff]
    %v446 = vld [vmem:[%s7 + $0x60] sm:$0xff]
    %v447 = vld [vmem:[%s7 + $0x68] sm:$0xff]
    %v448 = vld [vmem:[%s7 + $0x70] sm:$0xff]
    %v449 = vld [vmem:[%s7 + $0x78] sm:$0xff]
    %v450 = vld [vmem:[#allocation9] sm:$0x1]
    %v452 = vlaneseq
    %v453 = vshrl.u32 %v452, 7
    %v454 = vsub.s32 0, %v453
    %v455 = vrot.slane %v450, %v454
    %457 = vmatprep.subr.mxu0 0.0
    %458 = vmatpush1.msra.mxu0 %v434
    %459 = vmatprep.subr.mxu0 0.0
    %460 = vmatpush1.msra.mxu0 %v435
    %461 = vmatprep.subr.mxu0 0.0
    %462 = vmatpush1.msra.mxu0 %v436
    %463 = vmatprep.subr.mxu0 0.0
    %464 = vmatpush1.msra.mxu0 %v437
    %465 = vmatprep.subr.mxu0 0.0
    %466 = vmatpush1.msra.mxu0 %v438
    %467 = vmatprep.subr.mxu0 0.0
    %468 = vmatpush1.msra.mxu0 %v439
    %469 = vmatprep.subr.mxu0 0.0
    %470 = vmatpush1.msra.mxu0 %v440
    %471 = vmatprep.subr.mxu0 0.0
    %472 = vmatpush1.msra.mxu0 %v441
    %473 = vmatprep.subr.mxu0 0.0
    %474 = vmatpush1.msra.mxu0 %v442
    %475 = vmatprep.subr.mxu0 0.0
    %476 = vmatpush1.msra.mxu0 %v443
    %477 = vmatprep.subr.mxu0 0.0
    %478 = vmatpush1.msra.mxu0 %v444
    %479 = vmatprep.subr.mxu0 0.0
    %480 = vmatpush1.msra.mxu0 %v445
    %481 = vmatprep.subr.mxu0 0.0
    %482 = vmatpush1.msra.mxu0 %v446
    %483 = vmatprep.subr.mxu0 0.0
    %484 = vmatpush1.msra.mxu0 %v447
    %485 = vmatprep.subr.mxu0 0.0
    %486 = vmatpush1.msra.mxu0 %v448
    %487 = vmatprep.subr.mxu0 0.0
    %488 = vmatpush1.msra.mxu0 %v449
    %489 = vmatprep.subr.mxu0 0.0
    %490 = vmatpush1.msra.mxu0 0.0
    %491 = vmatprep.subr.mxu0 0.0
    %492 = vmatpush1.msra.mxu0 0.0
    %493 = vmatprep.subr.mxu0 0.0
    %494 = vmatpush1.msra.mxu0 0.0
    %495 = vmatprep.subr.mxu0 0.0
    %496 = vmatpush1.msra.mxu0 0.0
    %497 = vmatprep.subr.mxu0 0.0
    %498 = vmatpush1.msra.mxu0 0.0
    %499 = vmatprep.subr.mxu0 0.0
    %500 = vmatpush1.msra.mxu0 0.0
    %501 = vmatprep.subr.mxu0 0.0
    %502 = vmatpush1.msra.mxu0 0.0
    %503 = vmatprep.subr.mxu0 0.0
    %504 = vmatpush1.msra.mxu0 0.0
    %505 = vmatprep.subr.mxu0 0.0
    %506 = vmatpush1.msra.mxu0 0.0
    %507 = vmatprep.subr.mxu0 0.0
    %508 = vmatpush1.msra.mxu0 0.0
    %509 = vmatprep.subr.mxu0 0.0
    %510 = vmatpush1.msra.mxu0 0.0
    %511 = vmatprep.subr.mxu0 0.0
    %512 = vmatpush1.msra.mxu0 0.0
    %513 = vmatprep.subr.mxu0 0.0
    %514 = vmatpush1.msra.mxu0 0.0
    %515 = vmatprep.subr.mxu0 0.0
    %516 = vmatpush1.msra.mxu0 0.0
    %517 = vmatprep.subr.mxu0 0.0
    %518 = vmatpush1.msra.mxu0 0.0
    %519 = vmatprep.subr.mxu0 0.0
    %520 = vmatpush1.msra.mxu0 0.0
    %521 = vmatprep.mubr.f32.mxu0 0.0
    %522 = vmatmul.mubr.f32.gmra.mrb[0].mxu0 %v431
    %v523 = vpop.f32.mrb[0].mxu0
    %v524 = vadd.f32 %v455, %v523
    %v525 = vpop.f32.mrb[0].mxu0
    %526 = vdwg.mxu0
    %v527 = vmax.f32 %v524, 0.0
    %vm528 = vcmp.ne.f32.partialorder %v524, %v524
    %v529 = vadd.f32 %v524, 0.0
    %v530 = vand.u32 2147483647, %v524
    %v531 = vsub.f32 0.0, %v530
    %v532 = vmul.f32 %v531, 1.442695
    %v533 = vpow.pop %v532
    %v534 = vadd.f32 %v533, 1.0
    %v535 = vlog2.pop %v534
    %v536 = vmul.f32 %v535, 0.6931472
    %v537 = vmul.f32 -0.5, %v533
    %v538 = vadd.f32 %v537, 1.0
    %v539 = vmul.f32 %v538, %v533
    %v540 = vand.u32 2147483647, %v533
    %vm541 = vcmp.lt.f32.partialorder %v540, 0.0004427343
    %v542 = vsel %vm541, %v539, %v536
    %v543 = vadd.f32 %v527, %v542
    %v544 = vsel %vm528, %v529, %v543
    %v545 = vsub.f32 %v544, 0.6931472
    %v546 = vmul.f32 %v545, 2.0
    %v547 = vld [vmem:[%s9] sm:$0xff]
    %v548 = vld [vmem:[%s9 + $0x8] sm:$0xff]
    %v549 = vld [vmem:[%s9 + $0x10] sm:$0xff]
    %v550 = vld [vmem:[%s9 + $0x18] sm:$0xff]
    %v551 = vld [vmem:[%s9 + $0x20] sm:$0xff]
    %v552 = vld [vmem:[%s9 + $0x28] sm:$0xff]
    %v553 = vld [vmem:[%s9 + $0x30] sm:$0xff]
    %v554 = vld [vmem:[%s9 + $0x38] sm:$0xff]
    %v555 = vld [vmem:[#allocation10] sm:$0x1]
    %v557 = vlaneseq
    %v558 = vshrl.u32 %v557, 7
    %v559 = vsub.s32 0, %v558
    %v560 = vrot.slane %v555, %v559
    %vm562 = vcmask 523264
    %v564 = vsel %vm562, %v546, 0
    %566 = vmatprep.subr.mxu0 0.0
    %567 = vmatpush1.msra.mxu0 %v547
    %568 = vmatprep.subr.mxu0 0.0
    %569 = vmatpush1.msra.mxu0 %v548
    %570 = vmatprep.subr.mxu0 0.0
    %571 = vmatpush1.msra.mxu0 %v549
    %572 = vmatprep.subr.mxu0 0.0
    %573 = vmatpush1.msra.mxu0 %v550
    %574 = vmatprep.subr.mxu0 0.0
    %575 = vmatpush1.msra.mxu0 %v551
    %576 = vmatprep.subr.mxu0 0.0
    %577 = vmatpush1.msra.mxu0 %v552
    %578 = vmatprep.subr.mxu0 0.0
    %579 = vmatpush1.msra.mxu0 %v553
    %580 = vmatprep.subr.mxu0 0.0
    %581 = vmatpush1.msra.mxu0 %v554
    %582 = vmatprep.subr.mxu0 0.0
    %583 = vmatpush1.msra.mxu0 0.0
    %584 = vmatprep.subr.mxu0 0.0
    %585 = vmatpush1.msra.mxu0 0.0
    %586 = vmatprep.subr.mxu0 0.0
    %587 = vmatpush1.msra.mxu0 0.0
    %588 = vmatprep.subr.mxu0 0.0
    %589 = vmatpush1.msra.mxu0 0.0
    %590 = vmatprep.subr.mxu0 0.0
    %591 = vmatpush1.msra.mxu0 0.0
    %592 = vmatprep.subr.mxu0 0.0
    %593 = vmatpush1.msra.mxu0 0.0
    %594 = vmatprep.subr.mxu0 0.0
    %595 = vmatpush1.msra.mxu0 0.0
    %596 = vmatprep.subr.mxu0 0.0
    %597 = vmatpush1.msra.mxu0 0.0
    %598 = vmatprep.subr.mxu0 0.0
    %599 = vmatpush1.msra.mxu0 0.0
    %600 = vmatprep.subr.mxu0 0.0
    %601 = vmatpush1.msra.mxu0 0.0
    %602 = vmatprep.subr.mxu0 0.0
    %603 = vmatpush1.msra.mxu0 0.0
    %604 = vmatprep.subr.mxu0 0.0
    %605 = vmatpush1.msra.mxu0 0.0
    %606 = vmatprep.subr.mxu0 0.0
    %607 = vmatpush1.msra.mxu0 0.0
    %608 = vmatprep.subr.mxu0 0.0
    %609 = vmatpush1.msra.mxu0 0.0
    %610 = vmatprep.subr.mxu0 0.0
    %611 = vmatpush1.msra.mxu0 0.0
    %612 = vmatprep.subr.mxu0 0.0
    %613 = vmatpush1.msra.mxu0 0.0
    %614 = vmatprep.subr.mxu0 0.0
    %615 = vmatpush1.msra.mxu0 0.0
    %616 = vmatprep.subr.mxu0 0.0
    %617 = vmatpush1.msra.mxu0 0.0
    %618 = vmatprep.subr.mxu0 0.0
    %619 = vmatpush1.msra.mxu0 0.0
    %620 = vmatprep.subr.mxu0 0.0
    %621 = vmatpush1.msra.mxu0 0.0
    %622 = vmatprep.subr.mxu0 0.0
    %623 = vmatpush1.msra.mxu0 0.0
    %624 = vmatprep.subr.mxu0 0.0
    %625 = vmatpush1.msra.mxu0 0.0
    %626 = vmatprep.subr.mxu0 0.0
    %627 = vmatpush1.msra.mxu0 0.0
    %628 = vmatprep.subr.mxu0 0.0
    %629 = vmatpush1.msra.mxu0 0.0
    %630 = vmatprep.mubr.f32.mxu0 0.0
    %631 = vmatmul.mubr.f32.gmra.mrb[0].mxu0 %v564
    %v632 = vpop.f32.mrb[0].mxu0
    %v633 = vadd.f32 %v560, %v632
    %v634 = vpop.f32.mrb[0].mxu0
    %635 = vdwg.mxu0
    %v636 = vmax.f32 %v633, 0.0
    %vm637 = vcmp.ne.f32.partialorder %v633, %v633
    %v638 = vadd.f32 %v633, 0.0
    %v639 = vand.u32 2147483647, %v633
    %v640 = vsub.f32 0.0, %v639
    %v641 = vmul.f32 %v640, 1.442695
    %v642 = vpow.pop %v641
    %v643 = vadd.f32 %v642, 1.0
    %v644 = vlog2.pop %v643
    %v645 = vmul.f32 %v644, 0.6931472
    %v646 = vmul.f32 -0.5, %v642
    %v647 = vadd.f32 %v646, 1.0
    %v648 = vmul.f32 %v647, %v642
    %v649 = vand.u32 2147483647, %v642
    %vm650 = vcmp.lt.f32.partialorder %v649, 0.0004427343
    %v651 = vsel %vm650, %v648, %v645
    %v652 = vadd.f32 %v636, %v651
    %v653 = vsel %vm637, %v638, %v652
    %v654 = vsub.f32 %v653, 0.6931472
    %v655 = vmul.f32 %v654, 2.0
    %v656 = vld [vmem:[%s11] sm:$0xff]
    %v657 = vld [vmem:[%s11 + $0x8] sm:$0xff]
    %v658 = vld [vmem:[%s11 + $0x10] sm:$0xff]
    %v659 = vld [vmem:[%s11 + $0x18] sm:$0xff]
    %v660 = vld [vmem:[%s11 + $0x20] sm:$0xff]
    %v661 = vld [vmem:[%s11 + $0x28] sm:$0xff]
    %v662 = vld [vmem:[%s11 + $0x30] sm:$0xff]
    %v663 = vld [vmem:[%s11 + $0x38] sm:$0xff]
    %v664 = vld [vmem:[%s12] sm:$0x1]
    %v666 = vlaneseq
    %v667 = vshrl.u32 %v666, 7
    %v668 = vsub.s32 0, %v667
    %v669 = vrot.slane %v664, %v668
    %v672 = vsel %vm562, %v655, 0
    %674 = vmatprep.subr.mxu0 0.0
    %675 = vmatpush1.msra.mxu0 %v656
    %676 = vmatprep.subr.mxu0 0.0
    %677 = vmatpush1.msra.mxu0 %v657
    %678 = vmatprep.subr.mxu0 0.0
    %679 = vmatpush1.msra.mxu0 %v658
    %680 = vmatprep.subr.mxu0 0.0
    %681 = vmatpush1.msra.mxu0 %v659
    %682 = vmatprep.subr.mxu0 0.0
    %683 = vmatpush1.msra.mxu0 %v660
    %684 = vmatprep.subr.mxu0 0.0
    %685 = vmatpush1.msra.mxu0 %v661
    %686 = vmatprep.subr.mxu0 0.0
    %687 = vmatpush1.msra.mxu0 %v662
    %688 = vmatprep.subr.mxu0 0.0
    %689 = vmatpush1.msra.mxu0 %v663
    %690 = vmatprep.subr.mxu0 0.0
    %691 = vmatpush1.msra.mxu0 0.0
    %692 = vmatprep.subr.mxu0 0.0
    %693 = vmatpush1.msra.mxu0 0.0
    %694 = vmatprep.subr.mxu0 0.0
    %695 = vmatpush1.msra.mxu0 0.0
    %696 = vmatprep.subr.mxu0 0.0
    %697 = vmatpush1.msra.mxu0 0.0
    %698 = vmatprep.subr.mxu0 0.0
    %699 = vmatpush1.msra.mxu0 0.0
    %700 = vmatprep.subr.mxu0 0.0
    %701 = vmatpush1.msra.mxu0 0.0
    %702 = vmatprep.subr.mxu0 0.0
    %703 = vmatpush1.msra.mxu0 0.0
    %704 = vmatprep.subr.mxu0 0.0
    %705 = vmatpush1.msra.mxu0 0.0
    %706 = vmatprep.subr.mxu0 0.0
    %707 = vmatpush1.msra.mxu0 0.0
    %708 = vmatprep.subr.mxu0 0.0
    %709 = vmatpush1.msra.mxu0 0.0
    %710 = vmatprep.subr.mxu0 0.0
    %711 = vmatpush1.msra.mxu0 0.0
    %712 = vmatprep.subr.mxu0 0.0
    %713 = vmatpush1.msra.mxu0 0.0
    %714 = vmatprep.subr.mxu0 0.0
    %715 = vmatpush1.msra.mxu0 0.0
    %716 = vmatprep.subr.mxu0 0.0
    %717 = vmatpush1.msra.mxu0 0.0
    %718 = vmatprep.subr.mxu0 0.0
    %719 = vmatpush1.msra.mxu0 0.0
    %720 = vmatprep.subr.mxu0 0.0
    %721 = vmatpush1.msra.mxu0 0.0
    %722 = vmatprep.subr.mxu0 0.0
    %723 = vmatpush1.msra.mxu0 0.0
    %724 = vmatprep.subr.mxu0 0.0
    %725 = vmatpush1.msra.mxu0 0.0
    %726 = vmatprep.subr.mxu0 0.0
    %727 = vmatpush1.msra.mxu0 0.0
    %728 = vmatprep.subr.mxu0 0.0
    %729 = vmatpush1.msra.mxu0 0.0
    %730 = vmatprep.subr.mxu0 0.0
    %731 = vmatpush1.msra.mxu0 0.0
    %732 = vmatprep.subr.mxu0 0.0
    %733 = vmatpush1.msra.mxu0 0.0
    %734 = vmatprep.subr.mxu0 0.0
    %735 = vmatpush1.msra.mxu0 0.0
    %736 = vmatprep.subr.mxu0 0.0
    %737 = vmatpush1.msra.mxu0 0.0
    %738 = vmatprep.mubr.f32.mxu0 0.0
    %739 = vmatmul.mubr.f32.gmra.mrb[0].mxu0 %v672
    %v740 = vpop.f32.mrb[0].mxu0
    %v741 = vadd.f32 %v669, %v740
    %v742 = vpop.f32.mrb[0].mxu0
    %743 = vdwg.mxu0
    %v744 = vadd.f32 %v431, %v741
    %745 = vst [vmem:[%s13] sm:$0xff] %v744
    // Predicated region
    $region78: #{_splice_forward.1} parent=1 // pred_check
      _
    $region79: #{_splice_forward.1} parent=1 // pred_check_branch
      %747 = sbr.rel (0) target = $region81
    $region80: #{_splice_forward.1} parent=1 // pred_region
      _
    $region81: #{_splice_forward.1} parent=1 // pred_fallthru
      _
    // Predicated region
    $region82: #{_splice_forward.1} parent=1 // pred_check
      _
    $region83: #{_splice_forward.1} parent=1 // pred_check_branch
      %749 = sbr.rel (0) target = $region85
    $region84: #{_splice_forward.1} parent=1 // pred_region
      _
    $region85: #{_splice_forward.1} parent=1 // pred_fallthru
      _
    %750 = vsyncpa [#allocation3], 1
    %751 = vsyncpa [#allocation5], 1
    %752 = vsyncpa [#allocation8], 1
    %753 = vsyncpa [#allocation11], 1

</llo_original>
